<compile_context>
chip_gen: v7x
topology: tpu7x:2x2x1
jax: 0.10.0
libtpu: 0.0.40
codegen_flags: <defaults>
</compile_context>

<pallas_src>
import functools

import jax
import jax.numpy as jnp
from jax import lax
from jax.experimental import pallas as pl
from jax.experimental.pallas import tpu as pltpu


# ------------------------------------------------------------------ FLAGS ----
class FLAGS:
    width_mult_list = [0.5, 1.0]


EPS = 1e-5
_VMEM_LIMIT = 32 << 20          # safe on v5e/v6e/v7x
_TILE_TARGET_BYTES = 2 << 20    # ~2 MiB f32 tiles -> ~85%+ of HBM roofline


def _choose_l_tile(l, c, elem_bytes=4, target_bytes=_TILE_TARGET_BYTES):
    """Largest L tile that is a multiple of 128, divides L, and keeps one
    (C, L_tile) f32 slab near `target_bytes` (big enough to amortize per-step
    overhead, small enough for double-buffering under the VMEM limit)."""
    if l % 128 != 0:
        return l                                   # full-extent block fallback
    max_lanes = max(128, (target_bytes // max(c * elem_bytes, 1)) // 128 * 128)
    t = min(l, max_lanes)
    t -= t % 128
    while t > 128 and l % t != 0:
        t -= 128
    return t


# ---------------------------------------------------------------- kernels ----
def _bn_stats_kernel(x_ref, sum_ref, sumsq_ref):
    """Accumulate per-channel sum / sum-of-squares in f32.

    x_ref:               (1, C, L_tile)  block of the (N, C, L) input
    sum_ref, sumsq_ref:  (1, C, 1)       resident accumulators (per batch row)
    """
    @pl.when(pl.program_id(1) == 0)
    def _():
        sum_ref[...] = jnp.zeros_like(sum_ref)
        sumsq_ref[...] = jnp.zeros_like(sumsq_ref)

    x = x_ref[0].astype(jnp.float32)                      # (C, L_tile)
    # Lane-axis reduce: Mosaic lowers this as VPU vreg adds + one XLU reduce
    # per sublane group, so the XLU stays off the (mem-bound) critical path.
    sum_ref[0] += jnp.sum(x, axis=-1, keepdims=True)
    sumsq_ref[0] += jnp.sum(x * x, axis=-1, keepdims=True)


def _bn_norm_kernel(x_ref, scale_ref, shift_ref, o_ref):
    """y = x * scale + shift with per-channel (C, 1) scale/shift.

    x_ref / o_ref: (1, C, L_tile);  scale_ref / shift_ref: (C, 1) f32.
    """
    x = x_ref[0].astype(jnp.float32)                      # (C, L_tile)
    y = x * scale_ref[...] + shift_ref[...]               # fused affine: 2 ops/elem
    o_ref[0] = y.astype(o_ref.dtype)


# ---------------------------------------------------------------- wrapper ----
@jax.jit
def _batchnorm2d_pallas(x_nchw, gamma, beta):
    """Training-mode BatchNorm2d. x_nchw: (N, C, H, W); gamma/beta: (C,)."""
    n, c, h, w = x_nchw.shape
    l = h * w
    x = x_nchw.reshape(n, c, l)                 # free reshape, no data movement
    l_tile = _choose_l_tile(l, c)
    lg = l // l_tile

    # -------- phase 1: per-channel sum / sumsq (one streaming pass) ----------
    sum_o, sumsq_o = pl.pallas_call(
        _bn_stats_kernel,
        out_shape=(jax.ShapeDtypeStruct((n, c, 1), jnp.float32),
                   jax.ShapeDtypeStruct((n, c, 1), jnp.float32)),
        grid=(n, lg),
        in_specs=[pl.BlockSpec((1, c, l_tile), lambda ni, li: (ni, 0, li))],
        out_specs=(pl.BlockSpec((1, c, 1), lambda ni, li: (ni, 0, 0)),
                   pl.BlockSpec((1, c, 1), lambda ni, li: (ni, 0, 0))),
        compiler_params=pltpu.CompilerParams(
            dimension_semantics=("parallel", "arbitrary"),
            vmem_limit_bytes=_VMEM_LIMIT),
    )(x)

    # -------- tiny (C,)-sized glue: batch stats -> fused scale/shift ---------
    count = jnp.float32(n * l)
    total = jnp.sum(sum_o[:, :, 0], axis=0)                     # (C,)
    total_sq = jnp.sum(sumsq_o[:, :, 0], axis=0)                # (C,)
    mean = total / count
    var = jnp.maximum(total_sq / count - mean * mean, 0.0)      # biased variance
    scale = gamma.astype(jnp.float32) * lax.rsqrt(var + EPS)    # (C,)
    shift = beta.astype(jnp.float32) - mean * scale             # (C,)

    # -------- phase 2: normalize (second streaming pass) ---------------------
    y = pl.pallas_call(
        _bn_norm_kernel,
        out_shape=jax.ShapeDtypeStruct((n, c, l), x_nchw.dtype),
        grid=(n, lg),
        in_specs=[pl.BlockSpec((1, c, l_tile), lambda ni, li: (ni, 0, li)),
                  pl.BlockSpec((c, 1), lambda ni, li: (0, 0)),
                  pl.BlockSpec((c, 1), lambda ni, li: (0, 0))],
        out_specs=pl.BlockSpec((1, c, l_tile), lambda ni, li: (ni, 0, li)),
        compiler_params=pltpu.CompilerParams(
            dimension_semantics=("parallel", "parallel"),
            vmem_limit_bytes=_VMEM_LIMIT),
    )(x, scale.reshape(c, 1), shift.reshape(c, 1))

    return y.reshape(n, c, h, w)


# -------------------------------------------------------- module analogue ----
class SwitchableBatchNorm2d:
    """JAX/Pallas analogue of the PyTorch module (forward only, training mode)."""

    def __init__(self, num_features_list, key):
        self.num_features_list = num_features_list
        self.num_features = max(num_features_list)
        self.width_mult = max(FLAGS.width_mult_list)
        self.ignore_model_profiling = True
        # One (gamma, beta) pair per BN in the ModuleList, deterministic init.
        self.params = []
        for i, nf in enumerate(num_features_list):
            kg, kb = jax.random.split(jax.random.fold_in(key, i))
            gamma = 1.0 + 0.1 * jax.random.normal(kg, (nf,), jnp.float32)
            beta = 0.1 * jax.random.normal(kb, (nf,), jnp.float32)
            self.params.append((gamma, beta))

    def __call__(self, x_nchw):
        idx = FLAGS.width_mult_list.index(self.width_mult)
        gamma, beta = self.params[idx]
        assert x_nchw.shape[1] == self.num_features_list[idx]
        return _batchnorm2d_pallas(x_nchw, gamma, beta)


# ------------------------------------------------------------------- main ----
if __name__ == "__main__":
    key = jax.random.PRNGKey(0)
    k_x, k_p = jax.random.split(key)

    num_features_list = [2, 4]          # idx of max width_mult -> 4 channels
    N, C, H, W = 2, 4, 16, 16           # input matches the selected BN width
    x = jax.random.normal(k_x, (N, C, H, W), jnp.float32)

    sbn = SwitchableBatchNorm2d(num_features_list, k_p)
    y = sbn(x)
    y = jax.block_until_ready(y)

    # Pure-JAX reference (training-mode BN, biased variance).
    gamma, beta = sbn.params[FLAGS.width_mult_list.index(sbn.width_mult)]
    mean = jnp.mean(x, axis=(0, 2, 3), keepdims=True)
    var = jnp.mean((x - mean) ** 2, axis=(0, 2, 3), keepdims=True)
    y_ref = (x - mean) / jnp.sqrt(var + EPS) * gamma.reshape(1, C, 1, 1) \
        + beta.reshape(1, C, 1, 1)

    assert y.shape == (N, C, H, W) and y.dtype == x.dtype
    assert jnp.max(jnp.abs(y - y_ref)) < 1e-4

    print("KERNEL_OK")
</pallas_src>

<mosaic_0001>
module attributes {stable_mosaic.version = 11 : i64} {
  func.func @_bn_stats_kernel(%arg0: i32, %arg1: i32, %arg2: memref<1x4x256xf32, #tpu.memory_space<vmem>>, %arg3: memref<1x4x1xf32, #tpu.memory_space<vmem>>, %arg4: memref<1x4x1xf32, #tpu.memory_space<vmem>>) attributes {dimension_semantics = [#tpu.dimension_semantics<parallel>, #tpu.dimension_semantics<arbitrary>], iteration_bounds = array<i64: 2, 1>, scalar_prefetch = 0 : i64, scratch_operands = 0 : i64, tpu.core_type = #tpu.core_type<tc>, window_params = [{transform_indices = @transform_0, window_bounds = array<i64: 1, 4, 256>}, {transform_indices = @transform_1, window_bounds = array<i64: 1, 4, 1>}, {transform_indices = @transform_2, window_bounds = array<i64: 1, 4, 1>}]} {
    %c0_i32 = arith.constant 0 : i32
    %0 = arith.cmpi eq, %arg1, %c0_i32 : i32
    %1 = arith.extui %0 : i1 to i32
    %c0_i32_0 = arith.constant 0 : i32
    %2 = arith.cmpi ne, %1, %c0_i32_0 : i32
    scf.if %2 {
      %cst_16 = arith.constant 0.000000e+00 : f32
      %22 = vector.broadcast %cst_16 : f32 to vector<1x4x1xf32>
      %c0_17 = arith.constant 0 : index
      %c0_18 = arith.constant 0 : index
      %c0_19 = arith.constant 0 : index
      %23 = vector.load %arg3[%c0_17, %c0_18, %c0_19] : memref<1x4x1xf32, #tpu.memory_space<vmem>>, vector<1x4x1xf32>
      tpu.vector_store %arg3[%c0_17, %c0_18, %c0_19], %22 {strides = array<i32>} : memref<1x4x1xf32, #tpu.memory_space<vmem>>, vector<1x4x1xf32>,
      %cst_20 = arith.constant 0.000000e+00 : f32
      %24 = vector.broadcast %cst_20 : f32 to vector<1x4x1xf32>
      %c0_21 = arith.constant 0 : index
      %c0_22 = arith.constant 0 : index
      %c0_23 = arith.constant 0 : index
      %25 = vector.load %arg4[%c0_21, %c0_22, %c0_23] : memref<1x4x1xf32, #tpu.memory_space<vmem>>, vector<1x4x1xf32>
      tpu.vector_store %arg4[%c0_21, %c0_22, %c0_23], %24 {strides = array<i32>} : memref<1x4x1xf32, #tpu.memory_space<vmem>>, vector<1x4x1xf32>,
    } else {
    }
    %c0 = arith.constant 0 : index
    %c0_1 = arith.constant 0 : index
    %c0_2 = arith.constant 0 : index
    %3 = vector.load %arg2[%c0, %c0_1, %c0_2] : memref<1x4x256xf32, #tpu.memory_space<vmem>>, vector<1x4x256xf32>
    %4 = vector.shape_cast %3 : vector<1x4x256xf32> to vector<4x256xf32>
    %c0_3 = arith.constant 0 : index
    %c0_4 = arith.constant 0 : index
    %c0_5 = arith.constant 0 : index
    %5 = vector.load %arg3[%c0_3, %c0_4, %c0_5] : memref<1x4x1xf32, #tpu.memory_space<vmem>>, vector<1x4x1xf32>
    %6 = vector.shape_cast %5 : vector<1x4x1xf32> to vector<4x1xf32>
    %cst = arith.constant dense<0.000000e+00> : vector<4xf32>
    %7 = vector.multi_reduction <add>, %4, %cst [1] : vector<4x256xf32> to vector<4xf32>
    %8 = vector.shape_cast %7 : vector<4xf32> to vector<4x1xf32>
    %9 = arith.addf %6, %8 : vector<4x1xf32>
    %c0_6 = arith.constant 0 : index
    %c0_7 = arith.constant 0 : index
    %c0_8 = arith.constant 0 : index
    %10 = vector.load %arg3[%c0_6, %c0_7, %c0_8] : memref<1x4x1xf32, #tpu.memory_space<vmem>>, vector<1x4x1xf32>
    %11 = vector.shape_cast %10 : vector<1x4x1xf32> to vector<4x1xf32>
    %12 = vector.shape_cast %9 : vector<4x1xf32> to vector<1x4x1xf32>
    tpu.vector_store %arg3[%c0_6, %c0_7, %c0_8], %12 {strides = array<i32>} : memref<1x4x1xf32, #tpu.memory_space<vmem>>, vector<1x4x1xf32>,
    %c0_9 = arith.constant 0 : index
    %c0_10 = arith.constant 0 : index
    %c0_11 = arith.constant 0 : index
    %13 = vector.load %arg4[%c0_9, %c0_10, %c0_11] : memref<1x4x1xf32, #tpu.memory_space<vmem>>, vector<1x4x1xf32>
    %14 = vector.shape_cast %13 : vector<1x4x1xf32> to vector<4x1xf32>
    %15 = arith.mulf %4, %4 : vector<4x256xf32>
    %cst_12 = arith.constant dense<0.000000e+00> : vector<4xf32>
    %16 = vector.multi_reduction <add>, %15, %cst_12 [1] : vector<4x256xf32> to vector<4xf32>
    %17 = vector.shape_cast %16 : vector<4xf32> to vector<4x1xf32>
    %18 = arith.addf %14, %17 : vector<4x1xf32>
    %c0_13 = arith.constant 0 : index
    %c0_14 = arith.constant 0 : index
    %c0_15 = arith.constant 0 : index
    %19 = vector.load %arg4[%c0_13, %c0_14, %c0_15] : memref<1x4x1xf32, #tpu.memory_space<vmem>>, vector<1x4x1xf32>
    %20 = vector.shape_cast %19 : vector<1x4x1xf32> to vector<4x1xf32>
    %21 = vector.shape_cast %18 : vector<4x1xf32> to vector<1x4x1xf32>
    tpu.vector_store %arg4[%c0_13, %c0_14, %c0_15], %21 {strides = array<i32>} : memref<1x4x1xf32, #tpu.memory_space<vmem>>, vector<1x4x1xf32>,
    return
  }
  func.func @transform_0(%arg0: i32, %arg1: i32) -> (i32, i32, i32) {
    %c0_i32 = arith.constant 0 : i32
    %c0_i32_0 = arith.constant 0 : i32
    return %arg0, %c0_i32, %arg1 : i32, i32, i32
  }
  func.func @transform_1(%arg0: i32, %arg1: i32) -> (i32, i32, i32) {
    %c0_i32 = arith.constant 0 : i32
    %c0_i32_0 = arith.constant 0 : i32
    %c0_i32_1 = arith.constant 0 : i32
    return %arg0, %c0_i32, %c0_i32_0 : i32, i32, i32
  }
  func.func @transform_2(%arg0: i32, %arg1: i32) -> (i32, i32, i32) {
    %c0_i32 = arith.constant 0 : i32
    %c0_i32_0 = arith.constant 0 : i32
    %c0_i32_1 = arith.constant 0 : i32
    return %arg0, %c0_i32, %c0_i32_0 : i32, i32, i32
  }
}

module attributes {stable_mosaic.version = 11 : i64} {
  func.func @_bn_norm_kernel(%arg0: i32, %arg1: i32, %arg2: memref<1x4x256xf32, #tpu.memory_space<vmem>>, %arg3: memref<4x1xf32, #tpu.memory_space<vmem>>, %arg4: memref<4x1xf32, #tpu.memory_space<vmem>>, %arg5: memref<1x4x256xf32, #tpu.memory_space<vmem>>) attributes {dimension_semantics = [#tpu.dimension_semantics<parallel>, #tpu.dimension_semantics<parallel>], iteration_bounds = array<i64: 2, 1>, scalar_prefetch = 0 : i64, scratch_operands = 0 : i64, tpu.core_type = #tpu.core_type<tc>, window_params = [{transform_indices = @transform_0, window_bounds = array<i64: 1, 4, 256>}, {pipeline_mode = #tpu.pipeline_mode<synchronous>, transform_indices = @transform_1, window_bounds = array<i64: 4, 1>}, {pipeline_mode = #tpu.pipeline_mode<synchronous>, transform_indices = @transform_2, window_bounds = array<i64: 4, 1>}, {transform_indices = @transform_3, window_bounds = array<i64: 1, 4, 256>}]} {
    %c0 = arith.constant 0 : index
    %c0_0 = arith.constant 0 : index
    %c0_1 = arith.constant 0 : index
    %0 = vector.load %arg2[%c0, %c0_0, %c0_1] : memref<1x4x256xf32, #tpu.memory_space<vmem>>, vector<1x4x256xf32>
    %1 = vector.shape_cast %0 : vector<1x4x256xf32> to vector<4x256xf32>
    %c0_2 = arith.constant 0 : index
    %c0_3 = arith.constant 0 : index
    %2 = vector.load %arg3[%c0_2, %c0_3] : memref<4x1xf32, #tpu.memory_space<vmem>>, vector<4x1xf32>
    %3 = vector.broadcast %2 : vector<4x1xf32> to vector<4x256xf32>
    %4 = arith.mulf %1, %3 : vector<4x256xf32>
    %c0_4 = arith.constant 0 : index
    %c0_5 = arith.constant 0 : index
    %5 = vector.load %arg4[%c0_4, %c0_5] : memref<4x1xf32, #tpu.memory_space<vmem>>, vector<4x1xf32>
    %6 = vector.broadcast %5 : vector<4x1xf32> to vector<4x256xf32>
    %7 = arith.addf %4, %6 : vector<4x256xf32>
    %c0_6 = arith.constant 0 : index
    %c0_7 = arith.constant 0 : index
    %c0_8 = arith.constant 0 : index
    %8 = vector.load %arg5[%c0_6, %c0_7, %c0_8] : memref<1x4x256xf32, #tpu.memory_space<vmem>>, vector<1x4x256xf32>
    %9 = vector.shape_cast %8 : vector<1x4x256xf32> to vector<4x256xf32>
    %10 = vector.shape_cast %7 : vector<4x256xf32> to vector<1x4x256xf32>
    tpu.vector_store %arg5[%c0_6, %c0_7, %c0_8], %10 {strides = array<i32>} : memref<1x4x256xf32, #tpu.memory_space<vmem>>, vector<1x4x256xf32>,
    return
  }
  func.func @transform_0(%arg0: i32, %arg1: i32) -> (i32, i32, i32) {
    %c0_i32 = arith.constant 0 : i32
    %c0_i32_0 = arith.constant 0 : i32
    return %arg0, %c0_i32, %arg1 : i32, i32, i32
  }
  func.func @transform_1(%arg0: i32, %arg1: i32) -> (i32, i32) {
    %c0_i32 = arith.constant 0 : i32
    %c0_i32_0 = arith.constant 0 : i32
    %c0_i32_1 = arith.constant 0 : i32
    return %c0_i32, %c0_i32_0 : i32, i32
  }
  func.func @transform_2(%arg0: i32, %arg1: i32) -> (i32, i32) {
    %c0_i32 = arith.constant 0 : i32
    %c0_i32_0 = arith.constant 0 : i32
    %c0_i32_1 = arith.constant 0 : i32
    return %c0_i32, %c0_i32_0 : i32, i32
  }
  func.func @transform_3(%arg0: i32, %arg1: i32) -> (i32, i32, i32) {
    %c0_i32 = arith.constant 0 : i32
    %c0_i32_0 = arith.constant 0 : i32
    return %arg0, %c0_i32, %arg1 : i32, i32, i32
  }
}

</mosaic_0001>

<llo_original>
// kernel: _batchnorm2d_pallas.3
$region0: #{_batchnorm2d_pallas.3}
  #allocation0 [shape = 'u32[]', space=smem, size = 0x4, offset = 0x4, fixed_abs, tag = 'smem constant byte address 0x4 - core index']
  #allocation1 [shape = 'u32[144,128]{1,0:T(1,128)}', space=vmem, size = 0x12000, scoped, tag = 'internal scratch']
  %s0 = inlined_call_operand.vmem [shape: f32[2,4,256], index: 0, kind: input, shape index: {}]
  %s1 = inlined_call_operand.vmem [shape: f32[4,1], index: 1, kind: input, shape index: {}]
  %s2 = inlined_call_operand.vmem [shape: f32[4,1], index: 2, kind: input, shape index: {}]
  %s3 = inlined_call_operand.vmem [shape: f32[2,4,256], index: 3, kind: output, shape index: {}]
  %s4 = sld [smem:[#allocation0]]
  $region45: #{_batchnorm2d_pallas.3} parent=0
    _
  %s6 = ssub.s32 1, %s4
  %s7 = scalar_select 0, %s6, %s4
  loop: start=0, step=1, limit=4
  $region2: #{_batchnorm2d_pallas.3} parent=0 // loop_pre_header
    _
  $region3: #{_batchnorm2d_pallas.3} parent=0 // loop_header
    %s9 = sphi 0, %s13
    %p10 = scmp.ge.s32.totalorder %s9, 4
    %s16 = sphi 0, %s28
    %s17 = sphi 0, %s24
    %s18 = sphi 0, %s16
    %s19 = sphi 0, %s17
    %s20 = sphi 0, %s18
    %s21 = sphi 0, %s19
    %s33 = sphi 0, %s35
    %s36 = sphi 0, %s33
    %s37 = sphi 0, %s36
    %s53 = sphi 0, %s37
    %s57 = sphi 0, %s57
    %s59 = sphi 0, %s57
    %s60 = sphi 0, %s59
    %s74 = sphi 0, %s60
    %s78 = sphi 0, %s78
    %s80 = sphi 0, %s78
    %s81 = sphi 0, %s80
    %s95 = sphi 0, %s81
    %s103 = sphi 0, %s105
    %s106 = sphi 0, %s103
    %s107 = sphi 0, %s106
    %s123 = sphi 0, %s107
  $region4: #{_batchnorm2d_pallas.3} parent=0 // loop_header_branch
    %12 = sbr.rel (%p10) target = $region8
  $region5: #{_batchnorm2d_pallas.3} parent=0 // loop_body
    %s14 = ssub.s32 %s9, 1
    %s15 = ssub.s32 %s9, 2
    %s22 = sadd.s32 1, %s17
    %p23 = scmp.ge.s32.totalorder %s22, 1
    %s24 = scalar_select %p23, 0, %s22
    %s25 = sadd.s32 1, %s16
    %s26 = scalar_select %p23, %s25, %s16
    %p27 = scmp.ge.s32.totalorder %s26, 2
    %s28 = scalar_select %p27, 0, %s26
    %s29 = ssub.s32 %s16, %s28
    %s30 = ssub.s32 %s17, %s24
    %s31 = sor.u32 %s29, %s30
    %p32 = scmp.eq.s32.totalorder %s31, 0
    %s34 = sadd.s32 %s33, 1
    %s35 = scalar_select %p32, %s33, %s34
    %p38 = pneg %p32
    %p39 = scmp.eq.s32.totalorder %s9, 1
    %p40 = por %p38, %p39
    %p41 = scmp.ne.s32.totalorder %s33, %s36
    %p42 = scmp.eq.s32.totalorder %s9, 0
    %p43 = por %p41, %p42
    %p44 = scmp.ne.s32.totalorder %s33, %s36
    %p45 = scmp.eq.s32.totalorder %s14, 1
    %p46 = por %p44, %p45
    %p47 = scmp.ne.s32.totalorder %s36, %s37
    %p48 = scmp.eq.s32.totalorder %s14, 0
    %p49 = por %p47, %p48
    %p50 = scmp.ne.s32.totalorder %s36, %s37
    %p51 = scmp.eq.s32.totalorder %s15, 1
    %p52 = por %p50, %p51
    %p54 = scmp.ne.s32.totalorder %s37, %s53
    %p55 = scmp.eq.s32.totalorder %s15, 0
    %p56 = por %p54, %p55
    %s58 = sadd.s32 %s57, 1
    %p61 = scmp.eq.s32.totalorder %s9, 1
    %p62 = scmp.ne.s32.totalorder %s57, %s59
    %p63 = scmp.eq.s32.totalorder %s9, 0
    %p64 = por %p62, %p63
    %p65 = scmp.ne.s32.totalorder %s57, %s59
    %p66 = scmp.eq.s32.totalorder %s14, 1
    %p67 = por %p65, %p66
    %p68 = scmp.ne.s32.totalorder %s59, %s60
    %p69 = scmp.eq.s32.totalorder %s14, 0
    %p70 = por %p68, %p69
    %p71 = scmp.ne.s32.totalorder %s59, %s60
    %p72 = scmp.eq.s32.totalorder %s15, 1
    %p73 = por %p71, %p72
    %p75 = scmp.ne.s32.totalorder %s60, %s74
    %p76 = scmp.eq.s32.totalorder %s15, 0
    %p77 = por %p75, %p76
    %s79 = sadd.s32 %s78, 1
    %p82 = scmp.eq.s32.totalorder %s9, 1
    %p83 = scmp.ne.s32.totalorder %s78, %s80
    %p84 = scmp.eq.s32.totalorder %s9, 0
    %p85 = por %p83, %p84
    %p86 = scmp.ne.s32.totalorder %s78, %s80
    %p87 = scmp.eq.s32.totalorder %s14, 1
    %p88 = por %p86, %p87
    %p89 = scmp.ne.s32.totalorder %s80, %s81
    %p90 = scmp.eq.s32.totalorder %s14, 0
    %p91 = por %p89, %p90
    %p92 = scmp.ne.s32.totalorder %s80, %s81
    %p93 = scmp.eq.s32.totalorder %s15, 1
    %p94 = por %p92, %p93
    %p96 = scmp.ne.s32.totalorder %s81, %s95
    %p97 = scmp.eq.s32.totalorder %s15, 0
    %p98 = por %p96, %p97
    %s99 = ssub.s32 %s16, %s28
    %s100 = ssub.s32 %s17, %s24
    %s101 = sor.u32 %s99, %s100
    %p102 = scmp.eq.s32.totalorder %s101, 0
    %s104 = sadd.s32 %s103, 1
    %s105 = scalar_select %p102, %s103, %s104
    %p108 = pneg %p102
    %p109 = scmp.eq.s32.totalorder %s9, 1
    %p110 = por %p108, %p109
    %p111 = scmp.ne.s32.totalorder %s103, %s106
    %p112 = scmp.eq.s32.totalorder %s9, 0
    %p113 = por %p111, %p112
    %p114 = scmp.ne.s32.totalorder %s103, %s106
    %p115 = scmp.eq.s32.totalorder %s14, 1
    %p116 = por %p114, %p115
    %p117 = scmp.ne.s32.totalorder %s106, %s107
    %p118 = scmp.eq.s32.totalorder %s14, 0
    %p119 = por %p117, %p118
    %p120 = scmp.ne.s32.totalorder %s106, %s107
    %p121 = scmp.eq.s32.totalorder %s15, 1
    %p122 = por %p120, %p121
    %p124 = scmp.ne.s32.totalorder %s107, %s123
    %p125 = scmp.eq.s32.totalorder %s15, 0
    %p126 = por %p124, %p125
    %p127 = scmp.le.s32.totalorder 1, %s9
    %p128 = scmp.lt.s32.totalorder %s9, 3
    %p129 = pnand %p127, %p128
    %p130 = pneg %p129
    // Predicated region
    $region9: #{_batchnorm2d_pallas.3} parent=5 // pred_check
      _
    $region10: #{_batchnorm2d_pallas.3} parent=5 // pred_check_branch
      %132 = sbr.rel (%p129) target = $region12
    $region11: #{_batchnorm2d_pallas.3} parent=5 // pred_region
      %s133 = ssub.s32 %s9, 1
      // Predicated region
      $region13: #{_batchnorm2d_pallas.3} parent=11 // pred_check
        %p134 = pneg %p70
      $region14: #{_batchnorm2d_pallas.3} parent=11 // pred_check_branch
        %136 = sbr.rel (%p134) target = $region16
      $region15: #{_batchnorm2d_pallas.3} parent=11 // pred_region
        _
      $region16: #{_batchnorm2d_pallas.3} parent=11 // pred_fallthru
        _
      // Predicated region
      $region17: #{_batchnorm2d_pallas.3} parent=11 // pred_check
        %p137 = pneg %p91
      $region18: #{_batchnorm2d_pallas.3} parent=11 // pred_check_branch
        %139 = sbr.rel (%p137) target = $region20
      $region19: #{_batchnorm2d_pallas.3} parent=11 // pred_region
        _
      $region20: #{_batchnorm2d_pallas.3} parent=11 // pred_fallthru
        _
    $region12: #{_batchnorm2d_pallas.3} parent=5 // pred_fallthru
      _
    %p140 = scmp.lt.s32.totalorder %s9, 2
    // Predicated region
    $region21: #{_batchnorm2d_pallas.3} parent=5 // pred_check
      %p141 = pneg %p140
    $region22: #{_batchnorm2d_pallas.3} parent=5 // pred_check_branch
      %143 = sbr.rel (%p141) target = $region24
    $region23: #{_batchnorm2d_pallas.3} parent=5 // pred_region
      // Predicated region
      $region25: #{_batchnorm2d_pallas.3} parent=23 // pred_check
        %p144 = pneg %p43
      $region26: #{_batchnorm2d_pallas.3} parent=23 // pred_check_branch
        %146 = sbr.rel (%p144) target = $region28
      $region27: #{_batchnorm2d_pallas.3} parent=23 // pred_region
        %s147 = smul.u32 2, %s17
        %p148 = scmp.lt.s32.totalorder %s16, 1
        %s149 = scalar_select %p148, %s16, 1
        %p150 = scmp.lt.s32.totalorder %s147, 1
        %s151 = scalar_select %p150, %s147, 1
        %s152 = smul.addr %s149, 2
        %s153 = sadd.s32 %s151, %s152
        %s154 = smul.addr %s153, 4
        %s155 = scalar_lea.vmem %s0, %s154
        %s156 = smul.u32 2, %s17
      $region28: #{_batchnorm2d_pallas.3} parent=23 // pred_fallthru
        _
    $region24: #{_batchnorm2d_pallas.3} parent=5 // pred_fallthru
      _
    %p157 = scmp.le.s32.totalorder 1, %s9
    %p158 = scmp.lt.s32.totalorder %s9, 3
    %p159 = pnand %p157, %p158
    %p160 = pneg %p159
    // Predicated region
    $region29: #{_batchnorm2d_pallas.3} parent=5 // pred_check
      _
    $region30: #{_batchnorm2d_pallas.3} parent=5 // pred_check_branch
      %162 = sbr.rel (%p159) target = $region32
    $region31: #{_batchnorm2d_pallas.3} parent=5 // pred_region
      %s163 = ssub.s32 %s9, 1
      %s164 = smul.u32 2, %s19
      %p165 = scmp.lt.s32.totalorder %s18, 1
      %s166 = scalar_select %p165, %s18, 1
      %p167 = scmp.lt.s32.totalorder %s164, 1
      %s168 = scalar_select %p167, %s164, 1
      %s169 = smul.addr %s166, 2
      %s170 = sadd.s32 %s168, %s169
      %s171 = smul.addr %s170, 4
      %s172 = scalar_lea.vmem %s0, %s171
      %p173 = pneg %p49
      %p174 = pneg %p46
      %p175 = pneg %p70
      %p176 = pneg %p67
      %p177 = pneg %p91
      %p178 = pneg %p88
      %p179 = pneg %p119
      %p180 = pneg %p116
      %s181 = smul.u32 2, %s19
      %p182 = scmp.lt.s32.totalorder %s18, 1
      %s183 = scalar_select %p182, %s18, 1
      %p184 = scmp.lt.s32.totalorder %s181, 1
      %s185 = scalar_select %p184, %s181, 1
      %s186 = smul.addr %s183, 2
      %s187 = sadd.s32 %s185, %s186
      %s188 = smul.addr %s187, 4
      %s189 = scalar_lea.vmem %s3, %s188
      %s190 = smul.u32 2, %s19
      %p191 = scmp.lt.s32.totalorder %s18, 1
      %s192 = scalar_select %p191, %s18, 1
      %p193 = scmp.lt.s32.totalorder %s190, 1
      %s194 = scalar_select %p193, %s190, 1
      %s195 = smul.addr %s192, 2
      %s196 = sadd.s32 %s194, %s195
      %s197 = smul.addr %s196, 4
      %s198 = scalar_lea.vmem %s0, %s197
      %s199 = smul.u32 2, %s19
      %s200 = smul.u32 2, %s19
      %p201 = scmp.lt.s32.totalorder %s18, 1
      %s202 = scalar_select %p201, %s18, 1
      %p203 = scmp.lt.s32.totalorder %s200, 1
      %s204 = scalar_select %p203, %s200, 1
      %s205 = smul.addr %s202, 2
      %s206 = sadd.s32 %s204, %s205
      %s207 = smul.addr %s206, 4
      %s208 = scalar_lea.vmem %s3, %s207
      %s209 = smul.u32 2, %s19
      %v210 = vld [vmem:[%s198] sm:$0xff]
      %v211 = vld [vmem:[%s1] sm:$0xf]
      %213 = vset.pattern.permute.xlu0 0
      %214 = vperm.xlu0 %213, %v211
      %v215 = vpop.permute.xlu0 %214
      %v217 = vunpack.c.l.s4 839922192
      %v218 = vunpack.c.0.s8 %v217
      %v219 = vlaneseq
      %v220 = vshrl.u32 %v219, 7
      %v221 = vsub.s32 %v218, %v220
      %v222 = vrot.slane %v215, %v221
      %v224 = vmul.f32 %v210, %v222
      %v225 = vld [vmem:[%s2] sm:$0xf]
      %227 = vset.pattern.permute.xlu0 0
      %228 = vperm.xlu0 %227, %v225
      %v229 = vpop.permute.xlu0 %228
      %v231 = vunpack.c.l.s4 839922192
      %v232 = vunpack.c.0.s8 %v231
      %v233 = vlaneseq
      %v234 = vshrl.u32 %v233, 7
      %v235 = vsub.s32 %v232, %v234
      %v236 = vrot.slane %v229, %v235
      %v238 = vadd.f32 %v224, %v236
      %239 = vst [vmem:[%s208] sm:$0xff] %v238
      %s240 = smul.u32 2, %s19
      %p241 = scmp.lt.s32.totalorder %s18, 1
      %s242 = scalar_select %p241, %s18, 1
      %p243 = scmp.lt.s32.totalorder %s240, 1
      %s244 = scalar_select %p243, %s240, 1
      %s245 = smul.addr %s242, 2
      %s246 = sadd.s32 %s244, %s245
      %s247 = smul.addr %s246, 4
      %s248 = scalar_lea.vmem %s3, %s247
      // Predicated region
      $region33: #{_batchnorm2d_pallas.3} parent=31 // pred_check
        %p249 = pneg %p116
      $region34: #{_batchnorm2d_pallas.3} parent=31 // pred_check_branch
        %251 = sbr.rel (%p249) target = $region36
      $region35: #{_batchnorm2d_pallas.3} parent=31 // pred_region
        %s252 = smul.u32 2, %s19
      $region36: #{_batchnorm2d_pallas.3} parent=31 // pred_fallthru
        _
    $region32: #{_batchnorm2d_pallas.3} parent=5 // pred_fallthru
      _
    %p253 = scmp.le.s32.totalorder 2, %s9
    // Predicated region
    $region37: #{_batchnorm2d_pallas.3} parent=5 // pred_check
      %p254 = pneg %p253
    $region38: #{_batchnorm2d_pallas.3} parent=5 // pred_check_branch
      %256 = sbr.rel (%p254) target = $region40
    $region39: #{_batchnorm2d_pallas.3} parent=5 // pred_region
      %s257 = ssub.s32 %s9, 2
      // Predicated region
      $region41: #{_batchnorm2d_pallas.3} parent=39 // pred_check
        %p258 = pneg %p122
      $region42: #{_batchnorm2d_pallas.3} parent=39 // pred_check_branch
        %260 = sbr.rel (%p258) target = $region44
      $region43: #{_batchnorm2d_pallas.3} parent=39 // pred_region
        %s261 = smul.u32 2, %s21
        %p262 = scmp.lt.s32.totalorder %s20, 1
        %s263 = scalar_select %p262, %s20, 1
        %p264 = scmp.lt.s32.totalorder %s261, 1
        %s265 = scalar_select %p264, %s261, 1
        %s266 = smul.addr %s263, 2
        %s267 = sadd.s32 %s265, %s266
        %s268 = smul.addr %s267, 4
        %s269 = scalar_lea.vmem %s3, %s268
      $region44: #{_batchnorm2d_pallas.3} parent=39 // pred_fallthru
        _
    $region40: #{_batchnorm2d_pallas.3} parent=5 // pred_fallthru
      _
  $region6: #{_batchnorm2d_pallas.3} parent=0 // loop_footer
    %s13 = sadd.s32 1, %s9
  $region7: #{_batchnorm2d_pallas.3} parent=0 // loop_footer_branch
    %8 = sbr.rel target = $region3
  $region8: #{_batchnorm2d_pallas.3} parent=0 // loop_exit
    _

// kernel: _batchnorm2d_pallas.2
$region0: #{_batchnorm2d_pallas.2}
  #allocation0 [shape = 'u32[]', space=smem, size = 0x4, offset = 0x4, fixed_abs, tag = 'smem constant byte address 0x4 - core index']
  #allocation1 [shape = 'u32[144,128]{1,0:T(1,128)}', space=vmem, size = 0x12000, scoped, tag = 'internal scratch']
  %s0 = inlined_call_operand.vmem [shape: f32[2,4,256], index: 0, kind: input, shape index: {}]
  %s1 = inlined_call_operand.vmem [shape: f32[2,4,1], index: 1, kind: output, shape index: {0}]
  %s2 = inlined_call_operand.vmem [shape: f32[2,4,1], index: 2, kind: output, shape index: {1}]
  %3 = xla_tuple %s1, %s2
  %s4 = sld [smem:[#allocation0]]
  $region49: #{_batchnorm2d_pallas.2} parent=0
    _
  %s6 = ssub.s32 1, %s4
  %s7 = scalar_select 0, %s6, %s4
  loop: start=0, step=1, limit=4
  $region2: #{_batchnorm2d_pallas.2} parent=0 // loop_pre_header
    _
  $region3: #{_batchnorm2d_pallas.2} parent=0 // loop_header
    %s9 = sphi 0, %s13
    %p10 = scmp.ge.s32.totalorder %s9, 4
    %s16 = sphi 0, %s28
    %s17 = sphi 0, %s24
    %s18 = sphi 0, %s16
    %s19 = sphi 0, %s17
    %s20 = sphi 0, %s18
    %s21 = sphi 0, %s19
    %s33 = sphi 0, %s35
    %s36 = sphi 0, %s33
    %s37 = sphi 0, %s36
    %s53 = sphi 0, %s37
    %s59 = sphi 0, %s61
    %s62 = sphi 0, %s59
    %s63 = sphi 0, %s62
    %s79 = sphi 0, %s63
    %s85 = sphi 0, %s87
    %s88 = sphi 0, %s85
    %s89 = sphi 0, %s88
    %s105 = sphi 0, %s89
  $region4: #{_batchnorm2d_pallas.2} parent=0 // loop_header_branch
    %12 = sbr.rel (%p10) target = $region8
  $region5: #{_batchnorm2d_pallas.2} parent=0 // loop_body
    %s14 = ssub.s32 %s9, 1
    %s15 = ssub.s32 %s9, 2
    %s22 = sadd.s32 1, %s17
    %p23 = scmp.ge.s32.totalorder %s22, 1
    %s24 = scalar_select %p23, 0, %s22
    %s25 = sadd.s32 1, %s16
    %s26 = scalar_select %p23, %s25, %s16
    %p27 = scmp.ge.s32.totalorder %s26, 2
    %s28 = scalar_select %p27, 0, %s26
    %s29 = ssub.s32 %s16, %s28
    %s30 = ssub.s32 %s17, %s24
    %s31 = sor.u32 %s29, %s30
    %p32 = scmp.eq.s32.totalorder %s31, 0
    %s34 = sadd.s32 %s33, 1
    %s35 = scalar_select %p32, %s33, %s34
    %p38 = pneg %p32
    %p39 = scmp.eq.s32.totalorder %s9, 1
    %p40 = por %p38, %p39
    %p41 = scmp.ne.s32.totalorder %s33, %s36
    %p42 = scmp.eq.s32.totalorder %s9, 0
    %p43 = por %p41, %p42
    %p44 = scmp.ne.s32.totalorder %s33, %s36
    %p45 = scmp.eq.s32.totalorder %s14, 1
    %p46 = por %p44, %p45
    %p47 = scmp.ne.s32.totalorder %s36, %s37
    %p48 = scmp.eq.s32.totalorder %s14, 0
    %p49 = por %p47, %p48
    %p50 = scmp.ne.s32.totalorder %s36, %s37
    %p51 = scmp.eq.s32.totalorder %s15, 1
    %p52 = por %p50, %p51
    %p54 = scmp.ne.s32.totalorder %s37, %s53
    %p55 = scmp.eq.s32.totalorder %s15, 0
    %p56 = por %p54, %p55
    %s57 = ssub.s32 %s16, %s28
    %p58 = scmp.eq.s32.totalorder %s57, 0
    %s60 = sadd.s32 %s59, 1
    %s61 = scalar_select %p58, %s59, %s60
    %p64 = pneg %p58
    %p65 = scmp.eq.s32.totalorder %s9, 1
    %p66 = por %p64, %p65
    %p67 = scmp.ne.s32.totalorder %s59, %s62
    %p68 = scmp.eq.s32.totalorder %s9, 0
    %p69 = por %p67, %p68
    %p70 = scmp.ne.s32.totalorder %s59, %s62
    %p71 = scmp.eq.s32.totalorder %s14, 1
    %p72 = por %p70, %p71
    %p73 = scmp.ne.s32.totalorder %s62, %s63
    %p74 = scmp.eq.s32.totalorder %s14, 0
    %p75 = por %p73, %p74
    %p76 = scmp.ne.s32.totalorder %s62, %s63
    %p77 = scmp.eq.s32.totalorder %s15, 1
    %p78 = por %p76, %p77
    %p80 = scmp.ne.s32.totalorder %s63, %s79
    %p81 = scmp.eq.s32.totalorder %s15, 0
    %p82 = por %p80, %p81
    %s83 = ssub.s32 %s16, %s28
    %p84 = scmp.eq.s32.totalorder %s83, 0
    %s86 = sadd.s32 %s85, 1
    %s87 = scalar_select %p84, %s85, %s86
    %p90 = pneg %p84
    %p91 = scmp.eq.s32.totalorder %s9, 1
    %p92 = por %p90, %p91
    %p93 = scmp.ne.s32.totalorder %s85, %s88
    %p94 = scmp.eq.s32.totalorder %s9, 0
    %p95 = por %p93, %p94
    %p96 = scmp.ne.s32.totalorder %s85, %s88
    %p97 = scmp.eq.s32.totalorder %s14, 1
    %p98 = por %p96, %p97
    %p99 = scmp.ne.s32.totalorder %s88, %s89
    %p100 = scmp.eq.s32.totalorder %s14, 0
    %p101 = por %p99, %p100
    %p102 = scmp.ne.s32.totalorder %s88, %s89
    %p103 = scmp.eq.s32.totalorder %s15, 1
    %p104 = por %p102, %p103
    %p106 = scmp.ne.s32.totalorder %s89, %s105
    %p107 = scmp.eq.s32.totalorder %s15, 0
    %p108 = por %p106, %p107
    %p109 = scmp.le.s32.totalorder 1, %s9
    %p110 = scmp.lt.s32.totalorder %s9, 3
    %p111 = pnand %p109, %p110
    %p112 = pneg %p111
    // Predicated region
    $region9: #{_batchnorm2d_pallas.2} parent=5 // pred_check
      _
    $region10: #{_batchnorm2d_pallas.2} parent=5 // pred_check_branch
      %114 = sbr.rel (%p111) target = $region12
    $region11: #{_batchnorm2d_pallas.2} parent=5 // pred_region
      %s115 = ssub.s32 %s9, 1
    $region12: #{_batchnorm2d_pallas.2} parent=5 // pred_fallthru
      _
    %p116 = scmp.lt.s32.totalorder %s9, 2
    // Predicated region
    $region13: #{_batchnorm2d_pallas.2} parent=5 // pred_check
      %p117 = pneg %p116
    $region14: #{_batchnorm2d_pallas.2} parent=5 // pred_check_branch
      %119 = sbr.rel (%p117) target = $region16
    $region15: #{_batchnorm2d_pallas.2} parent=5 // pred_region
      // Predicated region
      $region17: #{_batchnorm2d_pallas.2} parent=15 // pred_check
        %p120 = pneg %p43
      $region18: #{_batchnorm2d_pallas.2} parent=15 // pred_check_branch
        %122 = sbr.rel (%p120) target = $region20
      $region19: #{_batchnorm2d_pallas.2} parent=15 // pred_region
        %s123 = smul.u32 2, %s17
        %p124 = scmp.lt.s32.totalorder %s16, 1
        %s125 = scalar_select %p124, %s16, 1
        %p126 = scmp.lt.s32.totalorder %s123, 1
        %s127 = scalar_select %p126, %s123, 1
        %s128 = smul.addr %s125, 2
        %s129 = sadd.s32 %s127, %s128
        %s130 = smul.addr %s129, 4
        %s131 = scalar_lea.vmem %s0, %s130
        %s132 = smul.u32 2, %s17
      $region20: #{_batchnorm2d_pallas.2} parent=15 // pred_fallthru
        _
    $region16: #{_batchnorm2d_pallas.2} parent=5 // pred_fallthru
      _
    %p133 = scmp.le.s32.totalorder 1, %s9
    %p134 = scmp.lt.s32.totalorder %s9, 3
    %p135 = pnand %p133, %p134
    %p136 = pneg %p135
    // Predicated region
    $region21: #{_batchnorm2d_pallas.2} parent=5 // pred_check
      _
    $region22: #{_batchnorm2d_pallas.2} parent=5 // pred_check_branch
      %138 = sbr.rel (%p135) target = $region24
    $region23: #{_batchnorm2d_pallas.2} parent=5 // pred_region
      %s139 = ssub.s32 %s9, 1
      %s140 = smul.u32 2, %s19
      %p141 = scmp.lt.s32.totalorder %s18, 1
      %s142 = scalar_select %p141, %s18, 1
      %p143 = scmp.lt.s32.totalorder %s140, 1
      %s144 = scalar_select %p143, %s140, 1
      %s145 = smul.addr %s142, 2
      %s146 = sadd.s32 %s144, %s145
      %s147 = smul.addr %s146, 4
      %s148 = scalar_lea.vmem %s0, %s147
      %p149 = pneg %p49
      %p150 = pneg %p46
      %p151 = pneg %p75
      %p152 = pneg %p72
      %p153 = scmp.lt.s32.totalorder %s18, 1
      %s154 = scalar_select %p153, %s18, 1
      %s155 = smul.addr %s154, 4
      %s156 = scalar_lea.vmem %s1, %s155
      %p157 = pneg %p101
      %p158 = pneg %p98
      %p159 = scmp.lt.s32.totalorder %s18, 1
      %s160 = scalar_select %p159, %s18, 1
      %s161 = smul.addr %s160, 4
      %s162 = scalar_lea.vmem %s2, %s161
      %s163 = smul.u32 2, %s19
      %p164 = scmp.lt.s32.totalorder %s18, 1
      %s165 = scalar_select %p164, %s18, 1
      %p166 = scmp.lt.s32.totalorder %s163, 1
      %s167 = scalar_select %p166, %s163, 1
      %s168 = smul.addr %s165, 2
      %s169 = sadd.s32 %s167, %s168
      %s170 = smul.addr %s169, 4
      %s171 = scalar_lea.vmem %s0, %s170
      %s172 = smul.u32 2, %s19
      %p173 = scmp.lt.s32.totalorder %s18, 1
      %s174 = scalar_select %p173, %s18, 1
      %s175 = smul.addr %s174, 4
      %s176 = scalar_lea.vmem %s1, %s175
      %p177 = scmp.lt.s32.totalorder %s18, 1
      %s178 = scalar_select %p177, %s18, 1
      %s179 = smul.addr %s178, 4
      %s180 = scalar_lea.vmem %s2, %s179
      %p181 = scmp.eq.s32.totalorder %s19, 0
      // Predicated region
      $region25: #{_batchnorm2d_pallas.2} parent=23 // pred_check
        %p182 = pneg %p181
      $region26: #{_batchnorm2d_pallas.2} parent=23 // pred_check_branch
        %184 = sbr.rel (%p182) target = $region28
      $region27: #{_batchnorm2d_pallas.2} parent=23 // pred_region
        %vm185 = vcmask 3072
        %186 = vst.msk [vmem:[%s176] sm:$0xf] %vm185, 0.0
        %187 = vst.msk [vmem:[%s180] sm:$0xf] %vm185, 0.0
      $region28: #{_batchnorm2d_pallas.2} parent=23 // pred_fallthru
        _
      %v188 = vld [vmem:[%s171] sm:$0xff]
      %v189 = vld [vmem:[%s176] sm:$0xf]
      %v191 = vcombine.high %v188, %v188
      %vm193 = vcmask 1043456
      %v194 = vsel %vm193, %v188, 0.0
      %v195 = vsel %vm193, %v191, 0.0
      %v196 = vadd.f32 %v194, %v195
      %197 = vadd.xlane.f32.xlu0 %v196
      %v198 = vpop.xlane.xlu0 %197
      %v199 = vadd.f32 %v189, %v198
      %vm200 = vcmask 3072
      %201 = vst.msk [vmem:[%s176] sm:$0xf] %vm200, %v199
      %v202 = vld [vmem:[%s180] sm:$0xf]
      %v203 = vmul.f32 %v188, %v188
      %v205 = vcombine.high %v203, %v203
      %v207 = vsel %vm193, %v203, 0.0
      %v208 = vsel %vm193, %v205, 0.0
      %v209 = vadd.f32 %v207, %v208
      %210 = vadd.xlane.f32.xlu0 %v209
      %v211 = vpop.xlane.xlu0 %210
      %v212 = vadd.f32 %v202, %v211
      %213 = vst.msk [vmem:[%s180] sm:$0xf] %vm200, %v212
      %p214 = scmp.lt.s32.totalorder %s18, 1
      %s215 = scalar_select %p214, %s18, 1
      %s216 = smul.addr %s215, 4
      %s217 = scalar_lea.vmem %s1, %s216
      %p218 = scmp.lt.s32.totalorder %s18, 1
      %s219 = scalar_select %p218, %s18, 1
      %s220 = smul.addr %s219, 4
      %s221 = scalar_lea.vmem %s2, %s220
      // Predicated region
      $region29: #{_batchnorm2d_pallas.2} parent=23 // pred_check
        %p222 = pneg %p72
      $region30: #{_batchnorm2d_pallas.2} parent=23 // pred_check_branch
        %224 = sbr.rel (%p222) target = $region32
      $region31: #{_batchnorm2d_pallas.2} parent=23 // pred_region
        _
      $region32: #{_batchnorm2d_pallas.2} parent=23 // pred_fallthru
        _
      // Predicated region
      $region33: #{_batchnorm2d_pallas.2} parent=23 // pred_check
        %p225 = pneg %p98
      $region34: #{_batchnorm2d_pallas.2} parent=23 // pred_check_branch
        %227 = sbr.rel (%p225) target = $region36
      $region35: #{_batchnorm2d_pallas.2} parent=23 // pred_region
        _
      $region36: #{_batchnorm2d_pallas.2} parent=23 // pred_fallthru
        _
    $region24: #{_batchnorm2d_pallas.2} parent=5 // pred_fallthru
      _
    %p228 = scmp.le.s32.totalorder 2, %s9
    // Predicated region
    $region37: #{_batchnorm2d_pallas.2} parent=5 // pred_check
      %p229 = pneg %p228
    $region38: #{_batchnorm2d_pallas.2} parent=5 // pred_check_branch
      %231 = sbr.rel (%p229) target = $region40
    $region39: #{_batchnorm2d_pallas.2} parent=5 // pred_region
      %s232 = ssub.s32 %s9, 2
      // Predicated region
      $region41: #{_batchnorm2d_pallas.2} parent=39 // pred_check
        %p233 = pneg %p78
      $region42: #{_batchnorm2d_pallas.2} parent=39 // pred_check_branch
        %235 = sbr.rel (%p233) target = $region44
      $region43: #{_batchnorm2d_pallas.2} parent=39 // pred_region
        %p236 = scmp.lt.s32.totalorder %s20, 1
        %s237 = scalar_select %p236, %s20, 1
        %s238 = smul.addr %s237, 4
        %s239 = scalar_lea.vmem %s1, %s238
      $region44: #{_batchnorm2d_pallas.2} parent=39 // pred_fallthru
        _
      // Predicated region
      $region45: #{_batchnorm2d_pallas.2} parent=39 // pred_check
        %p240 = pneg %p104
      $region46: #{_batchnorm2d_pallas.2} parent=39 // pred_check_branch
        %242 = sbr.rel (%p240) target = $region48
      $region47: #{_batchnorm2d_pallas.2} parent=39 // pred_region
        %p243 = scmp.lt.s32.totalorder %s20, 1
        %s244 = scalar_select %p243, %s20, 1
        %s245 = smul.addr %s244, 4
        %s246 = scalar_lea.vmem %s2, %s245
      $region48: #{_batchnorm2d_pallas.2} parent=39 // pred_fallthru
        _
    $region40: #{_batchnorm2d_pallas.2} parent=5 // pred_fallthru
      _
  $region6: #{_batchnorm2d_pallas.2} parent=0 // loop_footer
    %s13 = sadd.s32 1, %s9
  $region7: #{_batchnorm2d_pallas.2} parent=0 // loop_footer_branch
    %8 = sbr.rel target = $region3
  $region8: #{_batchnorm2d_pallas.2} parent=0 // loop_exit
    _

</llo_original>
